<compile_context>
chip_gen: v7x
topology: tpu7x:2x2x1
jax: 0.10.0
libtpu: 0.0.40
codegen_flags: <defaults>
</compile_context>

<pallas_src>
import numpy as np
import jax
import jax.numpy as jnp
from jax.experimental import pallas as pl
from jax.experimental.pallas import tpu as pltpu


def make_positional_encoding(d_model: int, max_len: int = 5000) -> jnp.ndarray:
    """Deterministic pe buffer, identical to the PyTorch __init__."""
    position = jnp.arange(max_len, dtype=jnp.float32)[:, None]            # [L, 1]
    div_term = jnp.exp(
        jnp.arange(0, d_model, 2, dtype=jnp.float32)
        * (-np.log(10000.0) / d_model)
    )                                                                     # [E/2]
    ang = position * div_term                                             # [L, E/2]
    # interleave: even cols = sin, odd cols = cos
    pe = jnp.stack([jnp.sin(ang), jnp.cos(ang)], axis=-1).reshape(max_len, d_model)
    return pe.astype(jnp.float32)


def _pos_enc_kernel(x_ref, pe_ref, o_ref):
    # x_ref: (TS, B*E) tile of rows; pe_ref: (1, B*E) resident slice.
    # VPU sublane-broadcast of pe over the TS rows; cast back to output dtype.
    o_ref[...] = (x_ref[...] + pe_ref[...]).astype(o_ref.dtype)


def _choose_tile_rows(n_rows: int, row_bytes: int,
                      target_bytes: int = 2 * 1024 * 1024) -> int:
    """Pick rows-per-block so a block is ~2 MiB (mem-bound sweet spot).

    Keeps the double-buffered working set (2x in + 2x out tiles + pe) under
    the smallest default scoped-VMEM limit (v5e: 16 MiB; v7x: 32 MiB).
    """
    ts = max(1, target_bytes // max(row_bytes, 1))
    if ts >= n_rows:
        return n_rows                    # single block covers everything
    ts = max(8, (ts // 8) * 8)           # sublane-aligned when tiling (8,128 rule)
    return min(ts, n_rows)


def positional_encoding_forward(x: jnp.ndarray, pe: jnp.ndarray,
                                *, force_pallas: bool = False) -> jnp.ndarray:
    """x: [S, B, E]; pe: [max_len, E]. Returns x + pe[:B] (eval-mode dropout = id)."""
    S, B, E = x.shape
    pe_slice = pe[:B]                                  # [B, E]  (matches pe[:x.shape[1]])

    total_bytes = x.size * x.dtype.itemsize
    if not force_pallas and total_bytes < (2 << 20):
        # Tiny input: Pallas launch/grid machinery costs more than the add.
        return (x + pe_slice[None, :, :]).astype(x.dtype)

    # Flatten trailing axes -> lane-dense last dim (free layout plumbing on a
    # contiguous row-major array).
    BE = B * E
    x2 = x.reshape(S, BE)
    pe2 = pe_slice.reshape(1, BE)                      # broadcast over rows in-kernel

    ts = _choose_tile_rows(S, BE * x.dtype.itemsize)
    grid = (pl.cdiv(S, ts),)

    out2 = pl.pallas_call(
        _pos_enc_kernel,
        out_shape=jax.ShapeDtypeStruct((S, BE), x.dtype),
        grid_spec=pltpu.PrefetchScalarGridSpec(
            num_scalar_prefetch=0,
            grid=grid,
            in_specs=[
                pl.BlockSpec((ts, BE), lambda i: (i, 0)),   # many rows per step
                pl.BlockSpec((1, BE), lambda i: (0, 0)),    # pe: resident, DMA'd once
            ],
            out_specs=pl.BlockSpec((ts, BE), lambda i: (i, 0)),
        ),
        compiler_params=pltpu.CompilerParams(
            dimension_semantics=("parallel",),   # v7x: 2 TCs split the row-tile axis
        ),
    )(x2, pe2)

    return out2.reshape(S, B, E)


if __name__ == "__main__":
    max_len = 64
    key = jax.random.PRNGKey(0)

    # Case 1: [seq_len, batch, d_model] with a lane-dense flattened width (4*32=128).
    S, B, E = 8, 4, 32
    k1, k2, k3 = jax.random.split(key, 3)
    x = jax.random.normal(k1, (S, B, E), dtype=jnp.float32)
    pe = make_positional_encoding(E, max_len=max_len)

    y = positional_encoding_forward(x, pe, force_pallas=True)
    y = jax.block_until_ready(y)
    y_ref = x + pe[:B][None, :, :]
    np.testing.assert_allclose(np.asarray(y), np.asarray(y_ref), rtol=1e-6, atol=1e-6)

    # Case 2: odd shapes (B*E not a multiple of 128) — correctness still holds
    # (block width equals the full flattened extent).
    S2, B2, E2 = 16, 3, 24
    x2 = jax.random.normal(k2, (S2, B2, E2), dtype=jnp.float32)
    pe2 = make_positional_encoding(E2, max_len=max_len)
    y2 = jax.block_until_ready(positional_encoding_forward(x2, pe2, force_pallas=True))
    y2_ref = x2 + pe2[:B2][None, :, :]
    np.testing.assert_allclose(np.asarray(y2), np.asarray(y2_ref), rtol=1e-6, atol=1e-6)

    # Case 3: bf16 input — kernel casts the f32-promoted sum back to bf16.
    xb = jax.random.normal(k3, (S, B, E), dtype=jnp.bfloat16)
    yb = jax.block_until_ready(positional_encoding_forward(xb, pe, force_pallas=True))
    yb_ref = (xb + pe[:B][None, :, :]).astype(jnp.bfloat16)
    np.testing.assert_allclose(np.asarray(yb, dtype=np.float32),
                               np.asarray(yb_ref, dtype=np.float32),
                               rtol=2e-2, atol=2e-2)

    print("KERNEL_OK")
</pallas_src>

<mosaic_0001>
module attributes {stable_mosaic.version = 11 : i64} {
  func.func @_pos_enc_kernel(%arg0: i32, %arg1: memref<8x128xf32, #tpu.memory_space<vmem>>, %arg2: memref<1x128xf32, #tpu.memory_space<vmem>>, %arg3: memref<8x128xf32, #tpu.memory_space<vmem>>) attributes {dimension_semantics = [#tpu.dimension_semantics<parallel>], iteration_bounds = array<i64: 1>, scalar_prefetch = 0 : i64, scratch_operands = 0 : i64, tpu.core_type = #tpu.core_type<tc>, window_params = [{transform_indices = @transform_0, window_bounds = array<i64: 8, 128>}, {pipeline_mode = #tpu.pipeline_mode<synchronous>, transform_indices = @transform_1, window_bounds = array<i64: 1, 128>}, {transform_indices = @transform_2, window_bounds = array<i64: 8, 128>}]} {
    %c0 = arith.constant 0 : index
    %c0_0 = arith.constant 0 : index
    %0 = vector.load %arg1[%c0, %c0_0] : memref<8x128xf32, #tpu.memory_space<vmem>>, vector<8x128xf32>
    %c0_1 = arith.constant 0 : index
    %c0_2 = arith.constant 0 : index
    %1 = vector.load %arg2[%c0_1, %c0_2] : memref<1x128xf32, #tpu.memory_space<vmem>>, vector<1x128xf32>
    %2 = vector.broadcast %1 : vector<1x128xf32> to vector<8x128xf32>
    %3 = arith.addf %0, %2 : vector<8x128xf32>
    %c0_3 = arith.constant 0 : index
    %c0_4 = arith.constant 0 : index
    %4 = vector.load %arg3[%c0_3, %c0_4] : memref<8x128xf32, #tpu.memory_space<vmem>>, vector<8x128xf32>
    tpu.vector_store %arg3[%c0_3, %c0_4], %3 {strides = array<i32>} : memref<8x128xf32, #tpu.memory_space<vmem>>, vector<8x128xf32>,
    return
  }
  func.func @transform_0(%arg0: i32) -> (i32, i32) {
    %c0_i32 = arith.constant 0 : i32
    %c0_i32_0 = arith.constant 0 : i32
    return %arg0, %c0_i32 : i32, i32
  }
  func.func @transform_1(%arg0: i32) -> (i32, i32) {
    %c0_i32 = arith.constant 0 : i32
    %c0_i32_0 = arith.constant 0 : i32
    %c0_i32_1 = arith.constant 0 : i32
    return %c0_i32, %c0_i32_0 : i32, i32
  }
  func.func @transform_2(%arg0: i32) -> (i32, i32) {
    %c0_i32 = arith.constant 0 : i32
    %c0_i32_0 = arith.constant 0 : i32
    return %arg0, %c0_i32 : i32, i32
  }
}

</mosaic_0001>

<llo_original>
// kernel: tpu_custom_call.1
$region0: #{tpu_custom_call.1}
  #allocation0 [shape = 'u32[]', space=smem, size = 0x4, offset = 0x4, fixed_abs, tag = 'smem constant byte address 0x4 - core index']
  #allocation1 [shape = 'u32[144,128]{1,0:T(1,128)}', space=vmem, size = 0x12000, scoped, tag = 'internal scratch']
  %s0 = inlined_call_operand.hbm [shape: f32[8,128], index: 0, kind: input, shape index: {}]
  %s1 = inlined_call_operand.vmem [shape: f32[1,128], index: 1, kind: input, shape index: {}]
  %s2 = inlined_call_operand.hbm [shape: f32[8,128], index: 2, kind: output, shape index: {}]
  %s3 = sld [smem:[#allocation0]]
  $region22: #{tpu_custom_call.1} parent=0
    _
  %s5 = ssub.s32 1, %s3
  %s6 = scalar_select 0, %s5, %s3
  $region1: #{tpu_custom_call.1} parent=0
    #allocation2 [shape = 'u8[4096]{0}', space=vmem, size = 0x1000, scoped, tag = 'input window, operand 0, single buffered']
    #allocation3 [shape = 's32[1]{0}', space=sflag, size = 0x4, scoped, tag = 'scoped memory for tpu_custom_call.1']
    #allocation4 [shape = 's32[1]{0}', space=sflag, size = 0x4, scoped, tag = 'scoped memory for tpu_custom_call.1']
    #allocation5 [shape = 'u8[4096]{0}', space=vmem, size = 0x1000, scoped, tag = 'output window, operand 0, single buffered']
    %7 = vsyncpa [#allocation3], 0
    %8 = vsyncpa [#allocation4], 0
    // Predicated region
    $region2: #{tpu_custom_call.1} parent=1 // pred_check
      _
    $region3: #{tpu_custom_call.1} parent=1 // pred_check_branch
      %10 = sbr.rel (0) target = $region5
    $region4: #{tpu_custom_call.1} parent=1 // pred_region
      %s12 = ssub.s32 128, 128
      %13 = vsyncadd [#allocation3], %s12
      %s15 = sshll.u32 [#allocation2], 4
      %s16 = int_to_ptr.vmem [resolvable:$true] %s15
      %18 = dma.hbm_to_vmem [thread:$0]  %s0, 128, %s16, [#allocation3]
    $region5: #{tpu_custom_call.1} parent=1 // pred_fallthru
      _
    // Predicated region
    $region6: #{tpu_custom_call.1} parent=1 // pred_check
      _
    $region7: #{tpu_custom_call.1} parent=1 // pred_check_branch
      %20 = sbr.rel (0) target = $region9
    $region8: #{tpu_custom_call.1} parent=1 // pred_region
      _
    $region9: #{tpu_custom_call.1} parent=1 // pred_fallthru
      _
    // Predicated region
    $region10: #{tpu_custom_call.1} parent=1 // pred_check
      _
    $region11: #{tpu_custom_call.1} parent=1 // pred_check_branch
      %22 = sbr.rel (0) target = $region13
    $region12: #{tpu_custom_call.1} parent=1 // pred_region
      %23 = dma.done [#allocation3], 128
    $region13: #{tpu_custom_call.1} parent=1 // pred_fallthru
      _
    %v24 = vld [vmem:[#allocation2] sm:$0xff]
    %v25 = vld [vmem:[%s1] sm:$0x1]
    %v27 = vlaneseq
    %v28 = vshrl.u32 %v27, 7
    %v29 = vsub.s32 0, %v28
    %v30 = vrot.slane %v25, %v29
    %v32 = vadd.f32 %v24, %v30
    %33 = vst [vmem:[#allocation5] sm:$0xff] %v32
    // Predicated region
    $region14: #{tpu_custom_call.1} parent=1 // pred_check
      _
    $region15: #{tpu_custom_call.1} parent=1 // pred_check_branch
      %35 = sbr.rel (0) target = $region17
    $region16: #{tpu_custom_call.1} parent=1 // pred_region
      %s37 = ssub.s32 128, 128
      %38 = vsyncadd [#allocation4], %s37
      %s40 = sshll.u32 [#allocation5], 4
      %s41 = int_to_ptr.vmem [resolvable:$true] %s40
      %43 = dma.vmem_to_hbm [thread:$0]  %s41, 128, %s2, [#allocation4]
    $region17: #{tpu_custom_call.1} parent=1 // pred_fallthru
      _
    // Predicated region
    $region18: #{tpu_custom_call.1} parent=1 // pred_check
      _
    $region19: #{tpu_custom_call.1} parent=1 // pred_check_branch
      %45 = sbr.rel (0) target = $region21
    $region20: #{tpu_custom_call.1} parent=1 // pred_region
      %46 = dma.done [#allocation4], 128
    $region21: #{tpu_custom_call.1} parent=1 // pred_fallthru
      _
    %47 = vsyncpa [#allocation3], 1
    %48 = vsyncpa [#allocation4], 1

</llo_original>
